<compile_context>
chip_gen: v7x
topology: tpu7x:2x2x1
jax: 0.10.0
libtpu: 0.0.40
codegen_flags: <defaults>
</compile_context>

<pallas_src>
import math

import jax
import jax.numpy as jnp
import numpy as np
from jax import lax
from jax.experimental import pallas as pl
from jax.experimental.pallas import tpu as pltpu

D_MODEL = 32
N_HEAD = 4
HEAD_DIM = D_MODEL // N_HEAD
D_FF = 4 * D_MODEL            # 128 (lane-dense)
SEQ = 8
BATCH = 2
TOKENS = SEQ * BATCH          # 16
LN_EPS = 1e-5
NEG_INF = -1e30

# Row layout of the packed (32, 128) f32 "consts" operand.
ROW_LN1_W, ROW_LN1_B = 0, 1
ROW_BO = 2
ROW_LN2_W, ROW_LN2_B = 3, 4
ROW_BPROJ = 5
ROW_BQKV = 6                  # full 128 lanes: [bq*scale | bk | bv | 0]
ROW_BFC = 7                   # full 128 lanes: c_fc bias
ROW_HEAD0 = 8                 # rows 8..11: {0,1} lane mask for head h at lanes [8h, 8h+8)
ROW_SCORE = 16                # rows 16..31, lanes 0..15: additive batch-separation bias


def _layernorm(x, w, b):
    mu = jnp.mean(x, axis=-1, keepdims=True)
    var = jnp.mean(jnp.square(x - mu), axis=-1, keepdims=True)
    return (x - mu) * lax.rsqrt(var + LN_EPS) * w + b


def _block_kernel(x_ref, w_in_ref, w_out_ref, consts_ref, o_ref):
    f32, bf16 = jnp.float32, jnp.bfloat16
    D, F, T = D_MODEL, D_FF, TOKENS

    def vec(row):                                   # (1, D) narrow constant row
        return consts_ref[row:row + 1, 0:D]

    x = x_ref[...].astype(f32)                      # (T, D) all tokens, one block

    # ---- attention branch: LN1 -> fused QKV -> masked MHA -> out proj ----
    h = _layernorm(x, vec(ROW_LN1_W), vec(ROW_LN1_B))
    # One fused matmul.  Output lanes: [0:D)=q*scale, [D:2D)=k, [2D:3D)=v, [3D:4D)=0.
    qkv = jnp.dot(h.astype(bf16), w_in_ref[0:D, :],
                  preferred_element_type=f32) + consts_ref[ROW_BQKV:ROW_BQKV + 1, :]
    # Realign the k / v 32-lane blocks onto lanes [0:D) (XLU roll; slot idle).
    k_al = pltpu.roll(qkv, shift=F - D, axis=1)      # lanes [0:D) now hold k + bk
    v_al = pltpu.roll(qkv, shift=F - 2 * D, axis=1)  # lanes [0:D) now hold v + bv
    q_b = qkv.astype(bf16)                           # scaled, biased q in lanes [0:D)

    score_bias = consts_ref[ROW_SCORE:ROW_SCORE + T, 0:T]   # (T, T) 0 / -1e30

    attn = jnp.zeros((T, F), f32)                    # head outputs land in lanes [0:D)
    for hd in range(N_HEAD):                         # static unroll, 4 heads
        m = consts_ref[ROW_HEAD0 + hd:ROW_HEAD0 + hd + 1, :]   # (1, F) {0,1} mask
        k_h = (k_al * m).astype(bf16)                # nonzero only on this head's lanes
        v_h = (v_al * m).astype(bf16)
        # s[t, t'] = sum_{d in head} q[t, d] * k[t', d]   (k_h masks the contraction)
        s = lax.dot_general(q_b, k_h, (((1,), (1,)), ((), ())),
                            preferred_element_type=f32) + score_bias
        s = s - jnp.max(s, axis=-1, keepdims=True)
        p = jnp.exp(s)
        p = p * pl.reciprocal(jnp.sum(p, axis=-1, keepdims=True), approx=True)
        attn = attn + jnp.dot(p.astype(bf16), v_h, preferred_element_type=f32)

    x = x + jnp.dot(attn.astype(bf16), w_out_ref[F:2 * F, :],
                    preferred_element_type=f32) + vec(ROW_BO)

    # ---- MLP branch: LN2 -> c_fc -> QuickGELU -> c_proj ----
    h2 = _layernorm(x, vec(ROW_LN2_W), vec(ROW_LN2_B))
    f = jnp.dot(h2.astype(bf16), w_in_ref[D:2 * D, :],
                preferred_element_type=f32) + consts_ref[ROW_BFC:ROW_BFC + 1, :]
    f = f * jax.nn.sigmoid(1.702 * f)                # QuickGELU (EUP)
    x = x + jnp.dot(f.astype(bf16), w_out_ref[0:F, :],
                    preferred_element_type=f32) + vec(ROW_BPROJ)

    o_ref[...] = x.astype(o_ref.dtype)


def prepare_params(p):
    """One-time packing OUTSIDE the kernel: split+transpose the fused QKV
    projection, fold the 1/sqrt(head_dim) scale into Wq/bq, and pack all
    operands into 3 arrays (plus x) so the kernel issues 4 DMAs total."""
    D, F, T = D_MODEL, D_FF, TOKENS
    scale = 1.0 / math.sqrt(HEAD_DIM)
    f32 = np.float32

    wq, wk, wv = np.split(np.asarray(p['w_qkv'], f32), 3, axis=0)   # (D, D), (out, in)
    bq, bk, bv = np.split(np.asarray(p['b_qkv'], f32), 3)

    # Input-side weights (contract over the D=32 model lanes), lane-dense 128 wide.
    w_qkv_t = np.concatenate([wq.T * scale, wk.T, wv.T, np.zeros((D, D), f32)], axis=1)
    w_fc_t = np.asarray(p['w_fc'], f32).T                            # (D, F)
    w_in = np.concatenate([w_qkv_t, w_fc_t], axis=0)                 # (2D, F) = (64, 128)

    # Output-side weights (contract over up to 128 lanes, produce D=32 lanes).
    w_out = np.zeros((2 * F, D), f32)                                # (256, 32)
    w_out[0:F] = np.asarray(p['w_proj'], f32).T                      # rows 0:128   = W_proj^T
    w_out[F:F + D] = np.asarray(p['w_o'], f32).T                     # rows 128:160 = W_o^T

    # Packed small constants: biases, LN vectors, head masks, score bias.
    c = np.zeros((32, 128), f32)
    c[ROW_LN1_W, :D] = np.asarray(p['ln1_w'], f32)
    c[ROW_LN1_B, :D] = np.asarray(p['ln1_b'], f32)
    c[ROW_BO, :D] = np.asarray(p['b_o'], f32)
    c[ROW_LN2_W, :D] = np.asarray(p['ln2_w'], f32)
    c[ROW_LN2_B, :D] = np.asarray(p['ln2_b'], f32)
    c[ROW_BPROJ, :D] = np.asarray(p['b_proj'], f32)
    c[ROW_BQKV, 0 * D:1 * D] = bq * scale
    c[ROW_BQKV, 1 * D:2 * D] = bk
    c[ROW_BQKV, 2 * D:3 * D] = bv
    c[ROW_BFC, :F] = np.asarray(p['b_fc'], f32)
    for h in range(N_HEAD):
        c[ROW_HEAD0 + h, h * HEAD_DIM:(h + 1) * HEAD_DIM] = 1.0
    # Batch-separation additive score bias for the row-major (L, N, D) -> (T, D)
    # flatten: token t belongs to batch t % BATCH (host-side %, any BATCH works).
    tok = np.arange(T)
    same = (tok[:, None] % BATCH) == (tok[None, :] % BATCH)
    c[ROW_SCORE:ROW_SCORE + T, :T] = np.where(same, 0.0, NEG_INF)
    # TODO(synk): fold an optional (L, L) additive attn_mask into this block if
    # a non-None mask is ever configured (the spec uses attn_mask=None).

    return dict(w_in=jnp.asarray(w_in, jnp.bfloat16),
                w_out=jnp.asarray(w_out, jnp.bfloat16),
                consts=jnp.asarray(c, jnp.float32))


def residual_attention_block(x_lnd, kp):
    """x_lnd: (L, N, D) like PyTorch (batch_first=False); returns (L, N, D)."""
    L, N, D = x_lnd.shape
    T = L * N
    xf = x_lnd.reshape(T, D)          # contiguous reshape: free, no transpose op

    flops = (2 * T * D * D_FF                    # fused QKV
             + N_HEAD * (2 * T * T * D_FF) * 2   # scores + PV
             + 2 * T * D_FF * D                  # attention out-proj
             + 2 * T * D * D_FF                  # c_fc
             + 2 * T * D_FF * D)                 # c_proj
    transcendentals = N_HEAD * T * T + T * D_FF
    bytes_accessed = (xf.size * 4 + kp['w_in'].size * 2 + kp['w_out'].size * 2
                      + kp['consts'].size * 4 + T * D * 4)

    out = pl.pallas_call(
        _block_kernel,
        out_shape=jax.ShapeDtypeStruct((T, D), x_lnd.dtype),
        # Grid-less call: whole 16x32 problem is one block (no per-step
        # bookkeeping, no double-buffering of the tiny operands).
        compiler_params=pltpu.CompilerParams(vmem_limit_bytes=32 * 1024 * 1024),
        cost_estimate=pl.CostEstimate(flops=flops,
                                      transcendentals=transcendentals,
                                      bytes_accessed=bytes_accessed),
    )(xf, kp['w_in'], kp['w_out'], kp['consts'])

    return out.reshape(L, N, D)


def reference(x_lnd, p):
    """Pure-JAX reference mirroring the PyTorch module (PyTorch-layout params)."""
    x = x_lnd.astype(jnp.float32)                      # (L, N, D)
    L, N, D = x.shape

    def ln(v, w, b):
        mu = v.mean(-1, keepdims=True)
        var = jnp.square(v - mu).mean(-1, keepdims=True)
        return (v - mu) / jnp.sqrt(var + LN_EPS) * w + b

    h = ln(x, p['ln1_w'], p['ln1_b'])
    qkv = h @ p['w_qkv'].T + p['b_qkv']                # (L, N, 3D)
    q, k, v = jnp.split(qkv, 3, axis=-1)

    def heads(t):                                      # -> (N, H, L, hd)
        return t.reshape(L, N, N_HEAD, HEAD_DIM).transpose(1, 2, 0, 3)

    qh, kh, vh = map(heads, (q, k, v))
    s = (qh / math.sqrt(HEAD_DIM)) @ kh.transpose(0, 1, 3, 2)
    pa = jax.nn.softmax(s, axis=-1)
    o = (pa @ vh).transpose(2, 0, 1, 3).reshape(L, N, D)
    x = x + o @ p['w_o'].T + p['b_o']

    h2 = ln(x, p['ln2_w'], p['ln2_b'])
    f = h2 @ p['w_fc'].T + p['b_fc']
    f = f * jax.nn.sigmoid(1.702 * f)
    return x + f @ p['w_proj'].T + p['b_proj']


if __name__ == "__main__":
    key = jax.random.PRNGKey(0)
    keys = jax.random.split(key, 10)

    def nrm(k, shape, scale=0.05):
        return (scale * jax.random.normal(k, shape)).astype(jnp.float32)

    params = {                                          # PyTorch-layout parameters
        'ln1_w': jnp.ones((D_MODEL,), jnp.float32),
        'ln1_b': jnp.zeros((D_MODEL,), jnp.float32),
        'w_qkv': nrm(keys[0], (3 * D_MODEL, D_MODEL)),
        'b_qkv': nrm(keys[1], (3 * D_MODEL,)),
        'w_o':   nrm(keys[2], (D_MODEL, D_MODEL)),
        'b_o':   nrm(keys[3], (D_MODEL,)),
        'ln2_w': jnp.ones((D_MODEL,), jnp.float32),
        'ln2_b': jnp.zeros((D_MODEL,), jnp.float32),
        'w_fc':  nrm(keys[4], (4 * D_MODEL, D_MODEL)),
        'b_fc':  nrm(keys[5], (4 * D_MODEL,)),
        'w_proj': nrm(keys[6], (D_MODEL, 4 * D_MODEL)),
        'b_proj': nrm(keys[7], (D_MODEL,)),
    }

    x = jax.random.normal(keys[8], (SEQ, BATCH, D_MODEL), dtype=jnp.float32)

    kparams = prepare_params(params)                    # done once, outside kernel
    out = jax.block_until_ready(residual_attention_block(x, kparams))
    ref = jax.block_until_ready(reference(x, params))

    # bf16 MXU operands (+ approx reciprocal in softmax) vs. the f32 reference.
    np.testing.assert_allclose(np.asarray(out), np.asarray(ref),
                               rtol=1e-2, atol=1e-2)
    print("KERNEL_OK")
</pallas_src>

<mosaic_0001>
module attributes {stable_mosaic.version = 11 : i64} {
  func.func @_block_kernel(%arg0: memref<16x32xf32, #tpu.memory_space<vmem>>, %arg1: memref<64x128xbf16, #tpu.memory_space<vmem>>, %arg2: memref<256x32xbf16, #tpu.memory_space<vmem>>, %arg3: memref<32x128xf32, #tpu.memory_space<vmem>>, %arg4: memref<16x32xf32, #tpu.memory_space<vmem>>) attributes {dimension_semantics = [], scalar_prefetch = 0 : i64, scratch_operands = 0 : i64, tpu.core_type = #tpu.core_type<tc>} {
    %c0 = arith.constant 0 : index
    %c0_0 = arith.constant 0 : index
    %0 = vector.load %arg0[%c0, %c0_0] : memref<16x32xf32, #tpu.memory_space<vmem>>, vector<16x32xf32>
    %c0_1 = arith.constant 0 : index
    %c0_2 = arith.constant 0 : index
    %1 = vector.load %arg3[%c0_1, %c0_2] : memref<32x128xf32, #tpu.memory_space<vmem>>, vector<1x32xf32>
    %c1 = arith.constant 1 : index
    %c0_3 = arith.constant 0 : index
    %2 = vector.load %arg3[%c1, %c0_3] : memref<32x128xf32, #tpu.memory_space<vmem>>, vector<1x32xf32>
    %cst = arith.constant dense<0.000000e+00> : vector<16xf32>
    %3 = vector.multi_reduction <add>, %0, %cst [1] : vector<16x32xf32> to vector<16xf32>
    %4 = vector.shape_cast %3 : vector<16xf32> to vector<16x1xf32>
    %cst_4 = arith.constant 3.200000e+01 : f32
    %5 = vector.broadcast %cst_4 : f32 to vector<16x1xf32>
    %6 = arith.divf %4, %5 : vector<16x1xf32>
    %7 = vector.broadcast %6 : vector<16x1xf32> to vector<16x32xf32>
    %8 = arith.subf %0, %7 : vector<16x32xf32>
    %9 = arith.mulf %8, %8 : vector<16x32xf32>
    %cst_5 = arith.constant dense<0.000000e+00> : vector<16xf32>
    %10 = vector.multi_reduction <add>, %9, %cst_5 [1] : vector<16x32xf32> to vector<16xf32>
    %11 = vector.shape_cast %10 : vector<16xf32> to vector<16x1xf32>
    %cst_6 = arith.constant 3.200000e+01 : f32
    %12 = vector.broadcast %cst_6 : f32 to vector<16x1xf32>
    %13 = arith.divf %11, %12 : vector<16x1xf32>
    %14 = vector.broadcast %6 : vector<16x1xf32> to vector<16x32xf32>
    %15 = arith.subf %0, %14 : vector<16x32xf32>
    %cst_7 = arith.constant 9.99999974E-6 : f32
    %16 = vector.broadcast %cst_7 : f32 to vector<16x1xf32>
    %17 = arith.addf %13, %16 : vector<16x1xf32>
    %18 = math.rsqrt %17 : vector<16x1xf32>
    %19 = vector.broadcast %18 : vector<16x1xf32> to vector<16x32xf32>
    %20 = arith.mulf %15, %19 : vector<16x32xf32>
    %21 = vector.broadcast %1 : vector<1x32xf32> to vector<16x32xf32>
    %22 = arith.mulf %20, %21 : vector<16x32xf32>
    %23 = vector.broadcast %2 : vector<1x32xf32> to vector<16x32xf32>
    %24 = arith.addf %22, %23 : vector<16x32xf32>
    %25 = arith.truncf %24 : vector<16x32xf32> to vector<16x32xbf16>
    %c0_8 = arith.constant 0 : index
    %c0_9 = arith.constant 0 : index
    %26 = vector.load %arg1[%c0_8, %c0_9] : memref<64x128xbf16, #tpu.memory_space<vmem>>, vector<32x128xbf16>
    %cst_10 = arith.constant dense<0.000000e+00> : vector<16x128xf32>
    %27 = tpu.matmul %25, %26, %cst_10 {dimension_numbers = #tpu.dot_dimension_numbers<[1], [0], [0], [1], [0, 0, 1, 1], [], []>} : vector<16x32xbf16>, vector<32x128xbf16>, vector<16x128xf32> -> vector<16x128xf32>
    %c6 = arith.constant 6 : index
    %c0_11 = arith.constant 0 : index
    %28 = vector.load %arg3[%c6, %c0_11] : memref<32x128xf32, #tpu.memory_space<vmem>>, vector<1x128xf32>
    %29 = vector.broadcast %28 : vector<1x128xf32> to vector<16x128xf32>
    %30 = arith.addf %27, %29 : vector<16x128xf32>
    %c96_i32 = arith.constant 96 : i32
    %31 = tpu.dynamic_rotate %30 by %c96_i32 dim 1 : vector<16x128xf32>, i32 -> vector<16x128xf32>
    %c64_i32 = arith.constant 64 : i32
    %32 = tpu.dynamic_rotate %30 by %c64_i32 dim 1 : vector<16x128xf32>, i32 -> vector<16x128xf32>
    %33 = arith.truncf %30 : vector<16x128xf32> to vector<16x128xbf16>
    %c16 = arith.constant 16 : index
    %c0_12 = arith.constant 0 : index
    %34 = vector.load %arg3[%c16, %c0_12] : memref<32x128xf32, #tpu.memory_space<vmem>>, vector<16x16xf32>
    %cst_13 = arith.constant 0.000000e+00 : f32
    %35 = vector.broadcast %cst_13 : f32 to vector<16x128xf32>
    %c8 = arith.constant 8 : index
    %c0_14 = arith.constant 0 : index
    %36 = vector.load %arg3[%c8, %c0_14] : memref<32x128xf32, #tpu.memory_space<vmem>>, vector<1x128xf32>
    %37 = vector.broadcast %36 : vector<1x128xf32> to vector<16x128xf32>
    %38 = arith.mulf %31, %37 : vector<16x128xf32>
    %39 = arith.truncf %38 : vector<16x128xf32> to vector<16x128xbf16>
    %40 = vector.broadcast %36 : vector<1x128xf32> to vector<16x128xf32>
    %41 = arith.mulf %32, %40 : vector<16x128xf32>
    %42 = arith.truncf %41 : vector<16x128xf32> to vector<16x128xbf16>
    %cst_15 = arith.constant dense<0.000000e+00> : vector<16x16xf32>
    %43 = tpu.matmul %33, %39, %cst_15 {dimension_numbers = #tpu.dot_dimension_numbers<[1], [1], [0], [0], [0, 0, 1, 0], [], []>} : vector<16x128xbf16>, vector<16x128xbf16>, vector<16x16xf32> -> vector<16x16xf32>
    %44 = arith.addf %43, %34 : vector<16x16xf32>
    %cst_16 = arith.constant dense<0xFF800000> : vector<16xf32>
    %45 = vector.multi_reduction <maximumf>, %44, %cst_16 [1] : vector<16x16xf32> to vector<16xf32>
    %46 = vector.shape_cast %45 : vector<16xf32> to vector<16x1xf32>
    %47 = vector.broadcast %46 : vector<16x1xf32> to vector<16x16xf32>
    %48 = arith.subf %44, %47 : vector<16x16xf32>
    %49 = math.exp %48 : vector<16x16xf32>
    %cst_17 = arith.constant dense<0.000000e+00> : vector<16xf32>
    %50 = vector.multi_reduction <add>, %49, %cst_17 [1] : vector<16x16xf32> to vector<16xf32>
    %51 = vector.shape_cast %50 : vector<16xf32> to vector<16x1xf32>
    %52 = tpu.reciprocal %51 {approx = true} : vector<16x1xf32> -> vector<16x1xf32>
    %53 = vector.broadcast %52 : vector<16x1xf32> to vector<16x16xf32>
    %54 = arith.mulf %49, %53 : vector<16x16xf32>
    %55 = arith.truncf %54 : vector<16x16xf32> to vector<16x16xbf16>
    %cst_18 = arith.constant dense<0.000000e+00> : vector<16x128xf32>
    %56 = tpu.matmul %55, %42, %cst_18 {dimension_numbers = #tpu.dot_dimension_numbers<[1], [0], [0], [1], [0, 0, 1, 1], [], []>} : vector<16x16xbf16>, vector<16x128xbf16>, vector<16x128xf32> -> vector<16x128xf32>
    %57 = arith.addf %35, %56 : vector<16x128xf32>
    %c9 = arith.constant 9 : index
    %c0_19 = arith.constant 0 : index
    %58 = vector.load %arg3[%c9, %c0_19] : memref<32x128xf32, #tpu.memory_space<vmem>>, vector<1x128xf32>
    %59 = vector.broadcast %58 : vector<1x128xf32> to vector<16x128xf32>
    %60 = arith.mulf %31, %59 : vector<16x128xf32>
    %61 = arith.truncf %60 : vector<16x128xf32> to vector<16x128xbf16>
    %62 = vector.broadcast %58 : vector<1x128xf32> to vector<16x128xf32>
    %63 = arith.mulf %32, %62 : vector<16x128xf32>
    %64 = arith.truncf %63 : vector<16x128xf32> to vector<16x128xbf16>
    %cst_20 = arith.constant dense<0.000000e+00> : vector<16x16xf32>
    %65 = tpu.matmul %33, %61, %cst_20 {dimension_numbers = #tpu.dot_dimension_numbers<[1], [1], [0], [0], [0, 0, 1, 0], [], []>} : vector<16x128xbf16>, vector<16x128xbf16>, vector<16x16xf32> -> vector<16x16xf32>
    %66 = arith.addf %65, %34 : vector<16x16xf32>
    %cst_21 = arith.constant dense<0xFF800000> : vector<16xf32>
    %67 = vector.multi_reduction <maximumf>, %66, %cst_21 [1] : vector<16x16xf32> to vector<16xf32>
    %68 = vector.shape_cast %67 : vector<16xf32> to vector<16x1xf32>
    %69 = vector.broadcast %68 : vector<16x1xf32> to vector<16x16xf32>
    %70 = arith.subf %66, %69 : vector<16x16xf32>
    %71 = math.exp %70 : vector<16x16xf32>
    %cst_22 = arith.constant dense<0.000000e+00> : vector<16xf32>
    %72 = vector.multi_reduction <add>, %71, %cst_22 [1] : vector<16x16xf32> to vector<16xf32>
    %73 = vector.shape_cast %72 : vector<16xf32> to vector<16x1xf32>
    %74 = tpu.reciprocal %73 {approx = true} : vector<16x1xf32> -> vector<16x1xf32>
    %75 = vector.broadcast %74 : vector<16x1xf32> to vector<16x16xf32>
    %76 = arith.mulf %71, %75 : vector<16x16xf32>
    %77 = arith.truncf %76 : vector<16x16xf32> to vector<16x16xbf16>
    %cst_23 = arith.constant dense<0.000000e+00> : vector<16x128xf32>
    %78 = tpu.matmul %77, %64, %cst_23 {dimension_numbers = #tpu.dot_dimension_numbers<[1], [0], [0], [1], [0, 0, 1, 1], [], []>} : vector<16x16xbf16>, vector<16x128xbf16>, vector<16x128xf32> -> vector<16x128xf32>
    %79 = arith.addf %57, %78 : vector<16x128xf32>
    %c10 = arith.constant 10 : index
    %c0_24 = arith.constant 0 : index
    %80 = vector.load %arg3[%c10, %c0_24] : memref<32x128xf32, #tpu.memory_space<vmem>>, vector<1x128xf32>
    %81 = vector.broadcast %80 : vector<1x128xf32> to vector<16x128xf32>
    %82 = arith.mulf %31, %81 : vector<16x128xf32>
    %83 = arith.truncf %82 : vector<16x128xf32> to vector<16x128xbf16>
    %84 = vector.broadcast %80 : vector<1x128xf32> to vector<16x128xf32>
    %85 = arith.mulf %32, %84 : vector<16x128xf32>
    %86 = arith.truncf %85 : vector<16x128xf32> to vector<16x128xbf16>
    %cst_25 = arith.constant dense<0.000000e+00> : vector<16x16xf32>
    %87 = tpu.matmul %33, %83, %cst_25 {dimension_numbers = #tpu.dot_dimension_numbers<[1], [1], [0], [0], [0, 0, 1, 0], [], []>} : vector<16x128xbf16>, vector<16x128xbf16>, vector<16x16xf32> -> vector<16x16xf32>
    %88 = arith.addf %87, %34 : vector<16x16xf32>
    %cst_26 = arith.constant dense<0xFF800000> : vector<16xf32>
    %89 = vector.multi_reduction <maximumf>, %88, %cst_26 [1] : vector<16x16xf32> to vector<16xf32>
    %90 = vector.shape_cast %89 : vector<16xf32> to vector<16x1xf32>
    %91 = vector.broadcast %90 : vector<16x1xf32> to vector<16x16xf32>
    %92 = arith.subf %88, %91 : vector<16x16xf32>
    %93 = math.exp %92 : vector<16x16xf32>
    %cst_27 = arith.constant dense<0.000000e+00> : vector<16xf32>
    %94 = vector.multi_reduction <add>, %93, %cst_27 [1] : vector<16x16xf32> to vector<16xf32>
    %95 = vector.shape_cast %94 : vector<16xf32> to vector<16x1xf32>
    %96 = tpu.reciprocal %95 {approx = true} : vector<16x1xf32> -> vector<16x1xf32>
    %97 = vector.broadcast %96 : vector<16x1xf32> to vector<16x16xf32>
    %98 = arith.mulf %93, %97 : vector<16x16xf32>
    %99 = arith.truncf %98 : vector<16x16xf32> to vector<16x16xbf16>
    %cst_28 = arith.constant dense<0.000000e+00> : vector<16x128xf32>
    %100 = tpu.matmul %99, %86, %cst_28 {dimension_numbers = #tpu.dot_dimension_numbers<[1], [0], [0], [1], [0, 0, 1, 1], [], []>} : vector<16x16xbf16>, vector<16x128xbf16>, vector<16x128xf32> -> vector<16x128xf32>
    %101 = arith.addf %79, %100 : vector<16x128xf32>
    %c11 = arith.constant 11 : index
    %c0_29 = arith.constant 0 : index
    %102 = vector.load %arg3[%c11, %c0_29] : memref<32x128xf32, #tpu.memory_space<vmem>>, vector<1x128xf32>
    %103 = vector.broadcast %102 : vector<1x128xf32> to vector<16x128xf32>
    %104 = arith.mulf %31, %103 : vector<16x128xf32>
    %105 = arith.truncf %104 : vector<16x128xf32> to vector<16x128xbf16>
    %106 = vector.broadcast %102 : vector<1x128xf32> to vector<16x128xf32>
    %107 = arith.mulf %32, %106 : vector<16x128xf32>
    %108 = arith.truncf %107 : vector<16x128xf32> to vector<16x128xbf16>
    %cst_30 = arith.constant dense<0.000000e+00> : vector<16x16xf32>
    %109 = tpu.matmul %33, %105, %cst_30 {dimension_numbers = #tpu.dot_dimension_numbers<[1], [1], [0], [0], [0, 0, 1, 0], [], []>} : vector<16x128xbf16>, vector<16x128xbf16>, vector<16x16xf32> -> vector<16x16xf32>
    %110 = arith.addf %109, %34 : vector<16x16xf32>
    %cst_31 = arith.constant dense<0xFF800000> : vector<16xf32>
    %111 = vector.multi_reduction <maximumf>, %110, %cst_31 [1] : vector<16x16xf32> to vector<16xf32>
    %112 = vector.shape_cast %111 : vector<16xf32> to vector<16x1xf32>
    %113 = vector.broadcast %112 : vector<16x1xf32> to vector<16x16xf32>
    %114 = arith.subf %110, %113 : vector<16x16xf32>
    %115 = math.exp %114 : vector<16x16xf32>
    %cst_32 = arith.constant dense<0.000000e+00> : vector<16xf32>
    %116 = vector.multi_reduction <add>, %115, %cst_32 [1] : vector<16x16xf32> to vector<16xf32>
    %117 = vector.shape_cast %116 : vector<16xf32> to vector<16x1xf32>
    %118 = tpu.reciprocal %117 {approx = true} : vector<16x1xf32> -> vector<16x1xf32>
    %119 = vector.broadcast %118 : vector<16x1xf32> to vector<16x16xf32>
    %120 = arith.mulf %115, %119 : vector<16x16xf32>
    %121 = arith.truncf %120 : vector<16x16xf32> to vector<16x16xbf16>
    %cst_33 = arith.constant dense<0.000000e+00> : vector<16x128xf32>
    %122 = tpu.matmul %121, %108, %cst_33 {dimension_numbers = #tpu.dot_dimension_numbers<[1], [0], [0], [1], [0, 0, 1, 1], [], []>} : vector<16x16xbf16>, vector<16x128xbf16>, vector<16x128xf32> -> vector<16x128xf32>
    %123 = arith.addf %101, %122 : vector<16x128xf32>
    %124 = arith.truncf %123 : vector<16x128xf32> to vector<16x128xbf16>
    %c128 = arith.constant 128 : index
    %c0_34 = arith.constant 0 : index
    %125 = vector.load %arg2[%c128, %c0_34] : memref<256x32xbf16, #tpu.memory_space<vmem>>, vector<128x32xbf16>
    %cst_35 = arith.constant dense<0.000000e+00> : vector<16x32xf32>
    %126 = tpu.matmul %124, %125, %cst_35 {dimension_numbers = #tpu.dot_dimension_numbers<[1], [0], [0], [1], [0, 0, 1, 1], [], []>} : vector<16x128xbf16>, vector<128x32xbf16>, vector<16x32xf32> -> vector<16x32xf32>
    %127 = arith.addf %0, %126 : vector<16x32xf32>
    %c2 = arith.constant 2 : index
    %c0_36 = arith.constant 0 : index
    %128 = vector.load %arg3[%c2, %c0_36] : memref<32x128xf32, #tpu.memory_space<vmem>>, vector<1x32xf32>
    %129 = vector.broadcast %128 : vector<1x32xf32> to vector<16x32xf32>
    %130 = arith.addf %127, %129 : vector<16x32xf32>
    %c3 = arith.constant 3 : index
    %c0_37 = arith.constant 0 : index
    %131 = vector.load %arg3[%c3, %c0_37] : memref<32x128xf32, #tpu.memory_space<vmem>>, vector<1x32xf32>
    %c4 = arith.constant 4 : index
    %c0_38 = arith.constant 0 : index
    %132 = vector.load %arg3[%c4, %c0_38] : memref<32x128xf32, #tpu.memory_space<vmem>>, vector<1x32xf32>
    %cst_39 = arith.constant dense<0.000000e+00> : vector<16xf32>
    %133 = vector.multi_reduction <add>, %130, %cst_39 [1] : vector<16x32xf32> to vector<16xf32>
    %134 = vector.shape_cast %133 : vector<16xf32> to vector<16x1xf32>
    %cst_40 = arith.constant 3.200000e+01 : f32
    %135 = vector.broadcast %cst_40 : f32 to vector<16x1xf32>
    %136 = arith.divf %134, %135 : vector<16x1xf32>
    %137 = vector.broadcast %136 : vector<16x1xf32> to vector<16x32xf32>
    %138 = arith.subf %130, %137 : vector<16x32xf32>
    %139 = arith.mulf %138, %138 : vector<16x32xf32>
    %cst_41 = arith.constant dense<0.000000e+00> : vector<16xf32>
    %140 = vector.multi_reduction <add>, %139, %cst_41 [1] : vector<16x32xf32> to vector<16xf32>
    %141 = vector.shape_cast %140 : vector<16xf32> to vector<16x1xf32>
    %cst_42 = arith.constant 3.200000e+01 : f32
    %142 = vector.broadcast %cst_42 : f32 to vector<16x1xf32>
    %143 = arith.divf %141, %142 : vector<16x1xf32>
    %144 = vector.broadcast %136 : vector<16x1xf32> to vector<16x32xf32>
    %145 = arith.subf %130, %144 : vector<16x32xf32>
    %cst_43 = arith.constant 9.99999974E-6 : f32
    %146 = vector.broadcast %cst_43 : f32 to vector<16x1xf32>
    %147 = arith.addf %143, %146 : vector<16x1xf32>
    %148 = math.rsqrt %147 : vector<16x1xf32>
    %149 = vector.broadcast %148 : vector<16x1xf32> to vector<16x32xf32>
    %150 = arith.mulf %145, %149 : vector<16x32xf32>
    %151 = vector.broadcast %131 : vector<1x32xf32> to vector<16x32xf32>
    %152 = arith.mulf %150, %151 : vector<16x32xf32>
    %153 = vector.broadcast %132 : vector<1x32xf32> to vector<16x32xf32>
    %154 = arith.addf %152, %153 : vector<16x32xf32>
    %155 = arith.truncf %154 : vector<16x32xf32> to vector<16x32xbf16>
    %c32 = arith.constant 32 : index
    %c0_44 = arith.constant 0 : index
    %156 = vector.load %arg1[%c32, %c0_44] : memref<64x128xbf16, #tpu.memory_space<vmem>>, vector<32x128xbf16>
    %cst_45 = arith.constant dense<0.000000e+00> : vector<16x128xf32>
    %157 = tpu.matmul %155, %156, %cst_45 {dimension_numbers = #tpu.dot_dimension_numbers<[1], [0], [0], [1], [0, 0, 1, 1], [], []>} : vector<16x32xbf16>, vector<32x128xbf16>, vector<16x128xf32> -> vector<16x128xf32>
    %c7 = arith.constant 7 : index
    %c0_46 = arith.constant 0 : index
    %158 = vector.load %arg3[%c7, %c0_46] : memref<32x128xf32, #tpu.memory_space<vmem>>, vector<1x128xf32>
    %159 = vector.broadcast %158 : vector<1x128xf32> to vector<16x128xf32>
    %160 = arith.addf %157, %159 : vector<16x128xf32>
    %cst_47 = arith.constant 1.702000e+00 : f32
    %161 = vector.broadcast %cst_47 : f32 to vector<16x128xf32>
    %162 = arith.mulf %161, %160 : vector<16x128xf32>
    %163 = arith.negf %162 : vector<16x128xf32>
    %164 = math.exp %163 : vector<16x128xf32>
    %cst_48 = arith.constant 1.000000e+00 : f32
    %165 = vector.broadcast %cst_48 : f32 to vector<16x128xf32>
    %166 = arith.addf %165, %164 : vector<16x128xf32>
    %167 = arith.divf %165, %166 : vector<16x128xf32>
    %168 = arith.mulf %160, %167 : vector<16x128xf32>
    %169 = arith.truncf %168 : vector<16x128xf32> to vector<16x128xbf16>
    %c0_49 = arith.constant 0 : index
    %c0_50 = arith.constant 0 : index
    %170 = vector.load %arg2[%c0_49, %c0_50] : memref<256x32xbf16, #tpu.memory_space<vmem>>, vector<128x32xbf16>
    %cst_51 = arith.constant dense<0.000000e+00> : vector<16x32xf32>
    %171 = tpu.matmul %169, %170, %cst_51 {dimension_numbers = #tpu.dot_dimension_numbers<[1], [0], [0], [1], [0, 0, 1, 1], [], []>} : vector<16x128xbf16>, vector<128x32xbf16>, vector<16x32xf32> -> vector<16x32xf32>
    %172 = arith.addf %130, %171 : vector<16x32xf32>
    %c5 = arith.constant 5 : index
    %c0_52 = arith.constant 0 : index
    %173 = vector.load %arg3[%c5, %c0_52] : memref<32x128xf32, #tpu.memory_space<vmem>>, vector<1x32xf32>
    %174 = vector.broadcast %173 : vector<1x32xf32> to vector<16x32xf32>
    %175 = arith.addf %172, %174 : vector<16x32xf32>
    %c0_53 = arith.constant 0 : index
    %c0_54 = arith.constant 0 : index
    %176 = vector.load %arg4[%c0_53, %c0_54] : memref<16x32xf32, #tpu.memory_space<vmem>>, vector<16x32xf32>
    tpu.vector_store %arg4[%c0_53, %c0_54], %175 {strides = array<i32>} : memref<16x32xf32, #tpu.memory_space<vmem>>, vector<16x32xf32>,
    return
  }
}

</mosaic_0001>

<llo_original>
// kernel: tpu_custom_call.1
$region0: #{tpu_custom_call.1}
  #allocation0 [shape = 'u32[]', space=smem, size = 0x4, offset = 0x4, fixed_abs, tag = 'smem constant byte address 0x4 - core index']
  #allocation1 [shape = 'u32[144,128]{1,0:T(1,128)}', space=vmem, size = 0x12000, scoped, tag = 'internal scratch']
  %s0 = inlined_call_operand.vmem [shape: f32[16,32], index: 0, kind: input, shape index: {}]
  %s1 = inlined_call_operand.vmem [shape: bf16[64,128], index: 1, kind: input, shape index: {}]
  %s2 = inlined_call_operand.vmem [shape: bf16[256,32], index: 2, kind: input, shape index: {}]
  %s3 = inlined_call_operand.vmem [shape: f32[32,128], index: 3, kind: input, shape index: {}]
  %s4 = inlined_call_operand.hbm [shape: f32[16,32], index: 4, kind: output, shape index: {}]
  %s5 = sld [smem:[#allocation0]]
  $region26: #{tpu_custom_call.1} parent=0
    _
  %s7 = ssub.s32 1, %s5
  %s8 = scalar_select 0, %s7, %s5
  $region1: #{tpu_custom_call.1} parent=0
    #allocation2 [shape = 'u8[8192]{0}', space=vmem, size = 0x2000, scoped, tag = 'output window, operand 0, single buffered']
    #allocation3 [shape = 's32[1]{0}', space=sflag, size = 0x4, scoped, tag = 'scoped memory for tpu_custom_call.1']
    %9 = vsyncpa [#allocation3], 0
    // Predicated region
    $region2: #{tpu_custom_call.1} parent=1 // pred_check
      _
    $region3: #{tpu_custom_call.1} parent=1 // pred_check_branch
      %11 = sbr.rel (0) target = $region5
    $region4: #{tpu_custom_call.1} parent=1 // pred_region
      _
    $region5: #{tpu_custom_call.1} parent=1 // pred_fallthru
      _
    // Predicated region
    $region6: #{tpu_custom_call.1} parent=1 // pred_check
      _
    $region7: #{tpu_custom_call.1} parent=1 // pred_check_branch
      %13 = sbr.rel (0) target = $region9
    $region8: #{tpu_custom_call.1} parent=1 // pred_region
      _
    $region9: #{tpu_custom_call.1} parent=1 // pred_fallthru
      _
    // Predicated region
    $region10: #{tpu_custom_call.1} parent=1 // pred_check
      _
    $region11: #{tpu_custom_call.1} parent=1 // pred_check_branch
      %15 = sbr.rel (0) target = $region13
    $region12: #{tpu_custom_call.1} parent=1 // pred_region
      _
    $region13: #{tpu_custom_call.1} parent=1 // pred_fallthru
      _
    // Predicated region
    $region14: #{tpu_custom_call.1} parent=1 // pred_check
      _
    $region15: #{tpu_custom_call.1} parent=1 // pred_check_branch
      %17 = sbr.rel (0) target = $region17
    $region16: #{tpu_custom_call.1} parent=1 // pred_region
      _
    $region17: #{tpu_custom_call.1} parent=1 // pred_fallthru
      _
    %v19 = vld [vmem:[%s0] sm:$0xff]
    %v20 = vld [vmem:[%s0 + $0x8] sm:$0xff]
    %v21 = vld [vmem:[%s3] sm:$0x1]
    %v22 = vld [vmem:[%s3 + $0x1] sm:$0x1]
    %vm23 = vcmask 261120
    %v24 = vsel %vm23, %v19, 0.0
    %25 = vadd.xlane.f32.xlu0 %v24
    %v26 = vpop.xlane.xlu0 %25
    %v27 = vsel %vm23, %v20, 0.0
    %28 = vadd.xlane.f32.xlu0 %v27
    %v29 = vpop.xlane.xlu0 %28
    %v30 = vrcp.pop 32.0
    %v31 = vmul.f32 %v26, %v30
    %v32 = vmul.f32 %v29, %v30
    %v33 = vsub.f32 %v19, %v31
    %v34 = vsub.f32 %v20, %v32
    %v35 = vmul.f32 %v33, %v33
    %v36 = vmul.f32 %v34, %v34
    %v37 = vsel %vm23, %v35, 0.0
    %38 = vadd.xlane.f32.xlu0 %v37
    %v39 = vpop.xlane.xlu0 %38
    %v40 = vsel %vm23, %v36, 0.0
    %41 = vadd.xlane.f32.xlu0 %v40
    %v42 = vpop.xlane.xlu0 %41
    %v43 = vmul.f32 %v39, %v30
    %v44 = vmul.f32 %v42, %v30
    %v45 = vadd.f32 %v43, 1e-05
    %v46 = vadd.f32 %v44, 1e-05
    %v47 = vrsqrt.pop %v45
    %v48 = vrsqrt.pop %v46
    %v49 = vmul.f32 %v33, %v47
    %v50 = vmul.f32 %v34, %v48
    %v51 = vlaneseq
    %v52 = vshrl.u32 %v51, 7
    %v53 = vsub.s32 0, %v52
    %v54 = vrot.slane %v21, %v53
    %v55 = vmul.f32 %v49, %v54
    %v56 = vmul.f32 %v50, %v54
    %v57 = vlaneseq
    %v58 = vshrl.u32 %v57, 7
    %v59 = vsub.s32 0, %v58
    %v60 = vrot.slane %v22, %v59
    %v61 = vadd.f32 %v55, %v60
    %v62 = vadd.f32 %v56, %v60
    %v63 = vpack.c.bf16 %v62, %v61
    %v64 = vld [vmem:[%s1] sm:$0xf]
    %v65 = vld [vmem:[%s1 + $0x4] sm:$0xf]
    %v66 = vld [vmem:[%s1 + $0x8] sm:$0xf]
    %v67 = vld [vmem:[%s1 + $0xc] sm:$0xf]
    %v68 = vld [vmem:[%s3 + $0x6] sm:$0x1]
    %v69 = vlaneseq
    %v70 = vshrl.u32 %v69, 7
    %v71 = vsub.s32 0, %v70
    %v72 = vrot.slane %v68, %v71
    %v77 = vunpack.c.l.b16 %v64
    %v78 = vunpack.c.l.b16 %v65
    %v79 = vunpack.c.l.b16 %v66
    %v80 = vunpack.c.l.b16 %v67
    %v81 = vpack.c.b16 %v78, %v77
    %v82 = vpack.c.b16 %v80, %v79
    %v86 = vsel %vm23, %v63, 0
    %88 = vmatprep.subr.bf16.mxu0 0
    %89 = vmatpush1.bf16.msra.mxu0 %v81
    %90 = vmatprep.subr.bf16.mxu0 0
    %91 = vmatpush1.bf16.msra.mxu0 %v82
    %92 = vmatprep.subr.bf16.mxu0 0
    %93 = vmatpush1.bf16.msra.mxu0 0
    %94 = vmatprep.subr.bf16.mxu0 0
    %95 = vmatpush1.bf16.msra.mxu0 0
    %96 = vmatprep.subr.bf16.mxu0 0
    %97 = vmatpush1.bf16.msra.mxu0 0
    %98 = vmatprep.subr.bf16.mxu0 0
    %99 = vmatpush1.bf16.msra.mxu0 0
    %100 = vmatprep.subr.bf16.mxu0 0
    %101 = vmatpush1.bf16.msra.mxu0 0
    %102 = vmatprep.subr.bf16.mxu0 0
    %103 = vmatpush1.bf16.msra.mxu0 0
    %104 = vmatprep.subr.bf16.mxu0 0
    %105 = vmatpush1.bf16.msra.mxu0 0
    %106 = vmatprep.subr.bf16.mxu0 0
    %107 = vmatpush1.bf16.msra.mxu0 0
    %108 = vmatprep.subr.bf16.mxu0 0
    %109 = vmatpush1.bf16.msra.mxu0 0
    %110 = vmatprep.subr.bf16.mxu0 0
    %111 = vmatpush1.bf16.msra.mxu0 0
    %112 = vmatprep.subr.bf16.mxu0 0
    %113 = vmatpush1.bf16.msra.mxu0 0
    %114 = vmatprep.subr.bf16.mxu0 0
    %115 = vmatpush1.bf16.msra.mxu0 0
    %116 = vmatprep.subr.bf16.mxu0 0
    %117 = vmatpush1.bf16.msra.mxu0 0
    %118 = vmatprep.subr.bf16.mxu0 0
    %119 = vmatpush1.bf16.msra.mxu0 0
    %120 = vmatprep.mubr.bf16.mxu0 0
    %121 = vmatmul.mubr.bf16.gmra.mrb[0].mxu0 %v86
    %v122 = vpop.f32.mrb[0].mxu0
    %v123 = vadd.f32 %v72, %v122
    %v124 = vpop.f32.mrb[0].mxu0
    %v125 = vpop.f32.mrb[0].mxu0
    %v126 = vadd.f32 %v72, %v125
    %v127 = vpop.f32.mrb[0].mxu0
    %128 = vdwg.mxu0
    %129 = vrot.lane.b32.xlu0 %v123, 96
    %v130 = vpop.permute.xlu0 %129
    %131 = vrot.lane.b32.xlu0 %v126, 96
    %v132 = vpop.permute.xlu0 %131
    %133 = vrot.lane.b32.xlu0 %v123, 64
    %v134 = vpop.permute.xlu0 %133
    %135 = vrot.lane.b32.xlu0 %v126, 64
    %v136 = vpop.permute.xlu0 %135
    %v137 = vpack.c.bf16 %v126, %v123
    %v138 = vld [vmem:[%s3 + $0x10] sm:$0xff]
    %v139 = vld [vmem:[%s3 + $0x18] sm:$0xff]
    %v140 = vld [vmem:[%s3 + $0x8] sm:$0x1]
    %v141 = vlaneseq
    %v142 = vshrl.u32 %v141, 7
    %v143 = vsub.s32 0, %v142
    %v144 = vrot.slane %v140, %v143
    %v145 = vmul.f32 %v130, %v144
    %v146 = vmul.f32 %v132, %v144
    %v147 = vpack.c.bf16 %v146, %v145
    %v148 = vmul.f32 %v134, %v144
    %v149 = vmul.f32 %v136, %v144
    %v150 = vpack.c.bf16 %v149, %v148
    %151 = vmatprep.subr.bf16.mxu0 0
    %152 = vmatpush1.bf16.xpose.msra.mxu0 %v147
    %153 = vmatprep.subr.bf16.mxu0 0
    %154 = vmatpush1.bf16.xpose.msra.mxu0 0
    %155 = vmatprep.subr.bf16.mxu0 0
    %156 = vmatpush1.bf16.xpose.msra.mxu0 0
    %157 = vmatprep.subr.bf16.mxu0 0
    %158 = vmatpush1.bf16.xpose.msra.mxu0 0
    %159 = vmatprep.subr.bf16.mxu0 0
    %160 = vmatpush1.bf16.xpose.msra.mxu0 0
    %161 = vmatprep.subr.bf16.mxu0 0
    %162 = vmatpush1.bf16.xpose.msra.mxu0 0
    %163 = vmatprep.subr.bf16.mxu0 0
    %164 = vmatpush1.bf16.xpose.msra.mxu0 0
    %165 = vmatprep.subr.bf16.mxu0 0
    %166 = vmatpush1.bf16.xpose.msra.mxu0 0
    %167 = vmatprep.subr.bf16.mxu0 0
    %168 = vmatpush1.bf16.xpose.msra.mxu0 0
    %169 = vmatprep.subr.bf16.mxu0 0
    %170 = vmatpush1.bf16.xpose.msra.mxu0 0
    %171 = vmatprep.subr.bf16.mxu0 0
    %172 = vmatpush1.bf16.xpose.msra.mxu0 0
    %173 = vmatprep.subr.bf16.mxu0 0
    %174 = vmatpush1.bf16.xpose.msra.mxu0 0
    %175 = vmatprep.subr.bf16.mxu0 0
    %176 = vmatpush1.bf16.xpose.msra.mxu0 0
    %177 = vmatprep.subr.bf16.mxu0 0
    %178 = vmatpush1.bf16.xpose.msra.mxu0 0
    %179 = vmatprep.subr.bf16.mxu0 0
    %180 = vmatpush1.bf16.xpose.msra.mxu0 0
    %181 = vmatprep.subr.bf16.mxu0 0
    %182 = vmatpush1.bf16.xpose.msra.mxu0 0
    %183 = vmatprep.mubr.bf16.mxu0 0
    %184 = vmatmul.mubr.bf16.gmra.mrb[0].mxu0 %v137
    %v185 = vpop.f32.mrb[0].mxu0
    %v186 = vadd.f32 %v138, %v185
    %v187 = vpop.f32.mrb[0].mxu0
    %v188 = vpop.f32.mrb[0].mxu0
    %v189 = vadd.f32 %v139, %v188
    %v190 = vpop.f32.mrb[0].mxu0
    %191 = vdwg.mxu0
    %vm192 = vcmask 130048
    %v193 = vsel %vm192, %v186, -inf
    %194 = vmax.xlane.f32.xlu0 %v193
    %v195 = vpop.xlane.xlu0 %194
    %v196 = vsel %vm192, %v189, -inf
    %197 = vmax.xlane.f32.xlu0 %v196
    %v198 = vpop.xlane.xlu0 %197
    %v199 = vsub.f32 %v186, %v195
    %v200 = vsub.f32 %v189, %v198
    %v201 = vmul.f32 %v199, 1.442695
    %v202 = vpow.pop %v201
    %v203 = vmul.f32 %v200, 1.442695
    %v204 = vpow.pop %v203
    %v205 = vsel %vm192, %v202, 0.0
    %206 = vadd.xlane.f32.xlu0 %v205
    %v207 = vpop.xlane.xlu0 %206
    %v208 = vsel %vm192, %v204, 0.0
    %209 = vadd.xlane.f32.xlu0 %v208
    %v210 = vpop.xlane.xlu0 %209
    %v211 = vrcp.pop %v207
    %v212 = vrcp.pop %v210
    %v213 = vmul.f32 %v202, %v211
    %v214 = vmul.f32 %v204, %v212
    %v215 = vpack.c.bf16 %v214, %v213
    %v216 = vld [vmem:[%s3 + $0x9] sm:$0x1]
    %v217 = vlaneseq
    %v218 = vshrl.u32 %v217, 7
    %v219 = vsub.s32 0, %v218
    %v220 = vrot.slane %v216, %v219
    %v221 = vmul.f32 %v130, %v220
    %v222 = vmul.f32 %v132, %v220
    %v223 = vpack.c.bf16 %v222, %v221
    %v224 = vmul.f32 %v134, %v220
    %v225 = vmul.f32 %v136, %v220
    %v226 = vpack.c.bf16 %v225, %v224
    %227 = vmatprep.subr.bf16.mxu0 0
    %228 = vmatpush1.bf16.xpose.msra.mxu0 %v223
    %229 = vmatprep.subr.bf16.mxu0 0
    %230 = vmatpush1.bf16.xpose.msra.mxu0 0
    %231 = vmatprep.subr.bf16.mxu0 0
    %232 = vmatpush1.bf16.xpose.msra.mxu0 0
    %233 = vmatprep.subr.bf16.mxu0 0
    %234 = vmatpush1.bf16.xpose.msra.mxu0 0
    %235 = vmatprep.subr.bf16.mxu0 0
    %236 = vmatpush1.bf16.xpose.msra.mxu0 0
    %237 = vmatprep.subr.bf16.mxu0 0
    %238 = vmatpush1.bf16.xpose.msra.mxu0 0
    %239 = vmatprep.subr.bf16.mxu0 0
    %240 = vmatpush1.bf16.xpose.msra.mxu0 0
    %241 = vmatprep.subr.bf16.mxu0 0
    %242 = vmatpush1.bf16.xpose.msra.mxu0 0
    %243 = vmatprep.subr.bf16.mxu0 0
    %244 = vmatpush1.bf16.xpose.msra.mxu0 0
    %245 = vmatprep.subr.bf16.mxu0 0
    %246 = vmatpush1.bf16.xpose.msra.mxu0 0
    %247 = vmatprep.subr.bf16.mxu0 0
    %248 = vmatpush1.bf16.xpose.msra.mxu0 0
    %249 = vmatprep.subr.bf16.mxu0 0
    %250 = vmatpush1.bf16.xpose.msra.mxu0 0
    %251 = vmatprep.subr.bf16.mxu0 0
    %252 = vmatpush1.bf16.xpose.msra.mxu0 0
    %253 = vmatprep.subr.bf16.mxu0 0
    %254 = vmatpush1.bf16.xpose.msra.mxu0 0
    %255 = vmatprep.subr.bf16.mxu0 0
    %256 = vmatpush1.bf16.xpose.msra.mxu0 0
    %257 = vmatprep.subr.bf16.mxu0 0
    %258 = vmatpush1.bf16.xpose.msra.mxu0 0
    %259 = vmatprep.mubr.bf16.mxu0 0
    %260 = vmatmul.mubr.bf16.gmra.mrb[0].mxu0 %v137
    %v261 = vpop.f32.mrb[0].mxu0
    %v262 = vadd.f32 %v138, %v261
    %v263 = vpop.f32.mrb[0].mxu0
    %v264 = vpop.f32.mrb[0].mxu0
    %v265 = vadd.f32 %v139, %v264
    %v266 = vpop.f32.mrb[0].mxu0
    %267 = vdwg.mxu0
    %v268 = vsel %vm192, %v262, -inf
    %269 = vmax.xlane.f32.xlu0 %v268
    %v270 = vpop.xlane.xlu0 %269
    %v271 = vsel %vm192, %v265, -inf
    %272 = vmax.xlane.f32.xlu0 %v271
    %v273 = vpop.xlane.xlu0 %272
    %v274 = vsub.f32 %v262, %v270
    %v275 = vsub.f32 %v265, %v273
    %v276 = vmul.f32 %v274, 1.442695
    %v277 = vpow.pop %v276
    %v278 = vmul.f32 %v275, 1.442695
    %v279 = vpow.pop %v278
    %v280 = vsel %vm192, %v277, 0.0
    %281 = vadd.xlane.f32.xlu0 %v280
    %v282 = vpop.xlane.xlu0 %281
    %v283 = vsel %vm192, %v279, 0.0
    %284 = vadd.xlane.f32.xlu0 %v283
    %v285 = vpop.xlane.xlu0 %284
    %v286 = vrcp.pop %v282
    %v287 = vrcp.pop %v285
    %v288 = vmul.f32 %v277, %v286
    %v289 = vmul.f32 %v279, %v287
    %v290 = vpack.c.bf16 %v289, %v288
    %v292 = vsel %vm192, %v290, 0
    %294 = vmatprep.subr.bf16.mxu0 0
    %295 = vmatpush1.bf16.msra.mxu0 %v226
    %296 = vmatprep.subr.bf16.mxu0 0
    %297 = vmatpush1.bf16.msra.mxu0 0
    %298 = vmatprep.subr.bf16.mxu0 0
    %299 = vmatpush1.bf16.msra.mxu0 0
    %300 = vmatprep.subr.bf16.mxu0 0
    %301 = vmatpush1.bf16.msra.mxu0 0
    %302 = vmatprep.subr.bf16.mxu0 0
    %303 = vmatpush1.bf16.msra.mxu0 0
    %304 = vmatprep.subr.bf16.mxu0 0
    %305 = vmatpush1.bf16.msra.mxu0 0
    %306 = vmatprep.subr.bf16.mxu0 0
    %307 = vmatpush1.bf16.msra.mxu0 0
    %308 = vmatprep.subr.bf16.mxu0 0
    %309 = vmatpush1.bf16.msra.mxu0 0
    %310 = vmatprep.subr.bf16.mxu0 0
    %311 = vmatpush1.bf16.msra.mxu0 0
    %312 = vmatprep.subr.bf16.mxu0 0
    %313 = vmatpush1.bf16.msra.mxu0 0
    %314 = vmatprep.subr.bf16.mxu0 0
    %315 = vmatpush1.bf16.msra.mxu0 0
    %316 = vmatprep.subr.bf16.mxu0 0
    %317 = vmatpush1.bf16.msra.mxu0 0
    %318 = vmatprep.subr.bf16.mxu0 0
    %319 = vmatpush1.bf16.msra.mxu0 0
    %320 = vmatprep.subr.bf16.mxu0 0
    %321 = vmatpush1.bf16.msra.mxu0 0
    %322 = vmatprep.subr.bf16.mxu0 0
    %323 = vmatpush1.bf16.msra.mxu0 0
    %324 = vmatprep.subr.bf16.mxu0 0
    %325 = vmatpush1.bf16.msra.mxu0 0
    %326 = vmatprep.mubr.bf16.mxu0 0
    %327 = vmatmul.mubr.bf16.gmra.mrb[0].mxu0 %v292
    %v328 = vpop.f32.mrb[0].mxu0
    %v329 = vadd.f32 0.0, %v328
    %v330 = vpop.f32.mrb[0].mxu0
    %v331 = vpop.f32.mrb[0].mxu0
    %v332 = vadd.f32 0.0, %v331
    %v333 = vpop.f32.mrb[0].mxu0
    %334 = vdwg.mxu0
    %v336 = vsel %vm192, %v215, 0
    %338 = vmatprep.subr.bf16.mxu0 0
    %339 = vmatpush1.bf16.msra.mxu0 %v150
    %340 = vmatprep.subr.bf16.mxu0 0
    %341 = vmatpush1.bf16.msra.mxu0 0
    %342 = vmatprep.subr.bf16.mxu0 0
    %343 = vmatpush1.bf16.msra.mxu0 0
    %344 = vmatprep.subr.bf16.mxu0 0
    %345 = vmatpush1.bf16.msra.mxu0 0
    %346 = vmatprep.subr.bf16.mxu0 0
    %347 = vmatpush1.bf16.msra.mxu0 0
    %348 = vmatprep.subr.bf16.mxu0 0
    %349 = vmatpush1.bf16.msra.mxu0 0
    %350 = vmatprep.subr.bf16.mxu0 0
    %351 = vmatpush1.bf16.msra.mxu0 0
    %352 = vmatprep.subr.bf16.mxu0 0
    %353 = vmatpush1.bf16.msra.mxu0 0
    %354 = vmatprep.subr.bf16.mxu0 0
    %355 = vmatpush1.bf16.msra.mxu0 0
    %356 = vmatprep.subr.bf16.mxu0 0
    %357 = vmatpush1.bf16.msra.mxu0 0
    %358 = vmatprep.subr.bf16.mxu0 0
    %359 = vmatpush1.bf16.msra.mxu0 0
    %360 = vmatprep.subr.bf16.mxu0 0
    %361 = vmatpush1.bf16.msra.mxu0 0
    %362 = vmatprep.subr.bf16.mxu0 0
    %363 = vmatpush1.bf16.msra.mxu0 0
    %364 = vmatprep.subr.bf16.mxu0 0
    %365 = vmatpush1.bf16.msra.mxu0 0
    %366 = vmatprep.subr.bf16.mxu0 0
    %367 = vmatpush1.bf16.msra.mxu0 0
    %368 = vmatprep.subr.bf16.mxu0 0
    %369 = vmatpush1.bf16.msra.mxu0 0
    %370 = vmatprep.mubr.bf16.mxu0 0
    %371 = vmatmul.mubr.bf16.gmra.mrb[0].mxu0 %v336
    %v372 = vpop.f32.mrb[0].mxu0
    %v373 = vadd.f32 %v329, %v372
    %v374 = vpop.f32.mrb[0].mxu0
    %v375 = vpop.f32.mrb[0].mxu0
    %v376 = vadd.f32 %v332, %v375
    %v377 = vpop.f32.mrb[0].mxu0
    %378 = vdwg.mxu0
    %v379 = vld [vmem:[%s3 + $0xa] sm:$0x1]
    %v380 = vlaneseq
    %v381 = vshrl.u32 %v380, 7
    %v382 = vsub.s32 0, %v381
    %v383 = vrot.slane %v379, %v382
    %v384 = vmul.f32 %v130, %v383
    %v385 = vmul.f32 %v132, %v383
    %v386 = vpack.c.bf16 %v385, %v384
    %v387 = vmul.f32 %v134, %v383
    %v388 = vmul.f32 %v136, %v383
    %v389 = vpack.c.bf16 %v388, %v387
    %390 = vmatprep.subr.bf16.mxu0 0
    %391 = vmatpush1.bf16.xpose.msra.mxu0 %v386
    %392 = vmatprep.subr.bf16.mxu0 0
    %393 = vmatpush1.bf16.xpose.msra.mxu0 0
    %394 = vmatprep.subr.bf16.mxu0 0
    %395 = vmatpush1.bf16.xpose.msra.mxu0 0
    %396 = vmatprep.subr.bf16.mxu0 0
    %397 = vmatpush1.bf16.xpose.msra.mxu0 0
    %398 = vmatprep.subr.bf16.mxu0 0
    %399 = vmatpush1.bf16.xpose.msra.mxu0 0
    %400 = vmatprep.subr.bf16.mxu0 0
    %401 = vmatpush1.bf16.xpose.msra.mxu0 0
    %402 = vmatprep.subr.bf16.mxu0 0
    %403 = vmatpush1.bf16.xpose.msra.mxu0 0
    %404 = vmatprep.subr.bf16.mxu0 0
    %405 = vmatpush1.bf16.xpose.msra.mxu0 0
    %406 = vmatprep.subr.bf16.mxu0 0
    %407 = vmatpush1.bf16.xpose.msra.mxu0 0
    %408 = vmatprep.subr.bf16.mxu0 0
    %409 = vmatpush1.bf16.xpose.msra.mxu0 0
    %410 = vmatprep.subr.bf16.mxu0 0
    %411 = vmatpush1.bf16.xpose.msra.mxu0 0
    %412 = vmatprep.subr.bf16.mxu0 0
    %413 = vmatpush1.bf16.xpose.msra.mxu0 0
    %414 = vmatprep.subr.bf16.mxu0 0
    %415 = vmatpush1.bf16.xpose.msra.mxu0 0
    %416 = vmatprep.subr.bf16.mxu0 0
    %417 = vmatpush1.bf16.xpose.msra.mxu0 0
    %418 = vmatprep.subr.bf16.mxu0 0
    %419 = vmatpush1.bf16.xpose.msra.mxu0 0
    %420 = vmatprep.subr.bf16.mxu0 0
    %421 = vmatpush1.bf16.xpose.msra.mxu0 0
    %422 = vmatprep.mubr.bf16.mxu0 0
    %423 = vmatmul.mubr.bf16.gmra.mrb[0].mxu0 %v137
    %v424 = vpop.f32.mrb[0].mxu0
    %v425 = vadd.f32 %v138, %v424
    %v426 = vpop.f32.mrb[0].mxu0
    %v427 = vpop.f32.mrb[0].mxu0
    %v428 = vadd.f32 %v139, %v427
    %v429 = vpop.f32.mrb[0].mxu0
    %430 = vdwg.mxu0
    %v431 = vsel %vm192, %v425, -inf
    %432 = vmax.xlane.f32.xlu0 %v431
    %v433 = vpop.xlane.xlu0 %432
    %v434 = vsel %vm192, %v428, -inf
    %435 = vmax.xlane.f32.xlu0 %v434
    %v436 = vpop.xlane.xlu0 %435
    %v437 = vsub.f32 %v425, %v433
    %v438 = vsub.f32 %v428, %v436
    %v439 = vmul.f32 %v437, 1.442695
    %v440 = vpow.pop %v439
    %v441 = vmul.f32 %v438, 1.442695
    %v442 = vpow.pop %v441
    %v443 = vsel %vm192, %v440, 0.0
    %444 = vadd.xlane.f32.xlu0 %v443
    %v445 = vpop.xlane.xlu0 %444
    %v446 = vsel %vm192, %v442, 0.0
    %447 = vadd.xlane.f32.xlu0 %v446
    %v448 = vpop.xlane.xlu0 %447
    %v449 = vrcp.pop %v445
    %v450 = vrcp.pop %v448
    %v451 = vmul.f32 %v440, %v449
    %v452 = vmul.f32 %v442, %v450
    %v453 = vpack.c.bf16 %v452, %v451
    %v455 = vsel %vm192, %v453, 0
    %457 = vmatprep.subr.bf16.mxu0 0
    %458 = vmatpush1.bf16.msra.mxu0 %v389
    %459 = vmatprep.subr.bf16.mxu0 0
    %460 = vmatpush1.bf16.msra.mxu0 0
    %461 = vmatprep.subr.bf16.mxu0 0
    %462 = vmatpush1.bf16.msra.mxu0 0
    %463 = vmatprep.subr.bf16.mxu0 0
    %464 = vmatpush1.bf16.msra.mxu0 0
    %465 = vmatprep.subr.bf16.mxu0 0
    %466 = vmatpush1.bf16.msra.mxu0 0
    %467 = vmatprep.subr.bf16.mxu0 0
    %468 = vmatpush1.bf16.msra.mxu0 0
    %469 = vmatprep.subr.bf16.mxu0 0
    %470 = vmatpush1.bf16.msra.mxu0 0
    %471 = vmatprep.subr.bf16.mxu0 0
    %472 = vmatpush1.bf16.msra.mxu0 0
    %473 = vmatprep.subr.bf16.mxu0 0
    %474 = vmatpush1.bf16.msra.mxu0 0
    %475 = vmatprep.subr.bf16.mxu0 0
    %476 = vmatpush1.bf16.msra.mxu0 0
    %477 = vmatprep.subr.bf16.mxu0 0
    %478 = vmatpush1.bf16.msra.mxu0 0
    %479 = vmatprep.subr.bf16.mxu0 0
    %480 = vmatpush1.bf16.msra.mxu0 0
    %481 = vmatprep.subr.bf16.mxu0 0
    %482 = vmatpush1.bf16.msra.mxu0 0
    %483 = vmatprep.subr.bf16.mxu0 0
    %484 = vmatpush1.bf16.msra.mxu0 0
    %485 = vmatprep.subr.bf16.mxu0 0
    %486 = vmatpush1.bf16.msra.mxu0 0
    %487 = vmatprep.subr.bf16.mxu0 0
    %488 = vmatpush1.bf16.msra.mxu0 0
    %489 = vmatprep.mubr.bf16.mxu0 0
    %490 = vmatmul.mubr.bf16.gmra.mrb[0].mxu0 %v455
    %v491 = vpop.f32.mrb[0].mxu0
    %v492 = vadd.f32 0.0, %v491
    %v493 = vpop.f32.mrb[0].mxu0
    %v494 = vpop.f32.mrb[0].mxu0
    %v495 = vadd.f32 0.0, %v494
    %v496 = vpop.f32.mrb[0].mxu0
    %497 = vdwg.mxu0
    %v498 = vadd.f32 %v373, %v492
    %v499 = vadd.f32 %v376, %v495
    %v500 = vld [vmem:[%s3 + $0xb] sm:$0x1]
    %v501 = vlaneseq
    %v502 = vshrl.u32 %v501, 7
    %v503 = vsub.s32 0, %v502
    %v504 = vrot.slane %v500, %v503
    %v505 = vmul.f32 %v130, %v504
    %v506 = vmul.f32 %v132, %v504
    %v507 = vpack.c.bf16 %v506, %v505
    %v508 = vmul.f32 %v134, %v504
    %v509 = vmul.f32 %v136, %v504
    %v510 = vpack.c.bf16 %v509, %v508
    %511 = vmatprep.subr.bf16.mxu0 0
    %512 = vmatpush1.bf16.xpose.msra.mxu0 %v507
    %513 = vmatprep.subr.bf16.mxu0 0
    %514 = vmatpush1.bf16.xpose.msra.mxu0 0
    %515 = vmatprep.subr.bf16.mxu0 0
    %516 = vmatpush1.bf16.xpose.msra.mxu0 0
    %517 = vmatprep.subr.bf16.mxu0 0
    %518 = vmatpush1.bf16.xpose.msra.mxu0 0
    %519 = vmatprep.subr.bf16.mxu0 0
    %520 = vmatpush1.bf16.xpose.msra.mxu0 0
    %521 = vmatprep.subr.bf16.mxu0 0
    %522 = vmatpush1.bf16.xpose.msra.mxu0 0
    %523 = vmatprep.subr.bf16.mxu0 0
    %524 = vmatpush1.bf16.xpose.msra.mxu0 0
    %525 = vmatprep.subr.bf16.mxu0 0
    %526 = vmatpush1.bf16.xpose.msra.mxu0 0
    %527 = vmatprep.subr.bf16.mxu0 0
    %528 = vmatpush1.bf16.xpose.msra.mxu0 0
    %529 = vmatprep.subr.bf16.mxu0 0
    %530 = vmatpush1.bf16.xpose.msra.mxu0 0
    %531 = vmatprep.subr.bf16.mxu0 0
    %532 = vmatpush1.bf16.xpose.msra.mxu0 0
    %533 = vmatprep.subr.bf16.mxu0 0
    %534 = vmatpush1.bf16.xpose.msra.mxu0 0
    %535 = vmatprep.subr.bf16.mxu0 0
    %536 = vmatpush1.bf16.xpose.msra.mxu0 0
    %537 = vmatprep.subr.bf16.mxu0 0
    %538 = vmatpush1.bf16.xpose.msra.mxu0 0
    %539 = vmatprep.subr.bf16.mxu0 0
    %540 = vmatpush1.bf16.xpose.msra.mxu0 0
    %541 = vmatprep.subr.bf16.mxu0 0
    %542 = vmatpush1.bf16.xpose.msra.mxu0 0
    %543 = vmatprep.mubr.bf16.mxu0 0
    %544 = vmatmul.mubr.bf16.gmra.mrb[0].mxu0 %v137
    %v545 = vpop.f32.mrb[0].mxu0
    %v546 = vadd.f32 %v138, %v545
    %v547 = vpop.f32.mrb[0].mxu0
    %v548 = vpop.f32.mrb[0].mxu0
    %v549 = vadd.f32 %v139, %v548
    %v550 = vpop.f32.mrb[0].mxu0
    %551 = vdwg.mxu0
    %v552 = vsel %vm192, %v546, -inf
    %553 = vmax.xlane.f32.xlu0 %v552
    %v554 = vpop.xlane.xlu0 %553
    %v555 = vsel %vm192, %v549, -inf
    %556 = vmax.xlane.f32.xlu0 %v555
    %v557 = vpop.xlane.xlu0 %556
    %v558 = vsub.f32 %v546, %v554
    %v559 = vsub.f32 %v549, %v557
    %v560 = vmul.f32 %v558, 1.442695
    %v561 = vpow.pop %v560
    %v562 = vmul.f32 %v559, 1.442695
    %v563 = vpow.pop %v562
    %v564 = vsel %vm192, %v561, 0.0
    %565 = vadd.xlane.f32.xlu0 %v564
    %v566 = vpop.xlane.xlu0 %565
    %v567 = vsel %vm192, %v563, 0.0
    %568 = vadd.xlane.f32.xlu0 %v567
    %v569 = vpop.xlane.xlu0 %568
    %v570 = vrcp.pop %v566
    %v571 = vrcp.pop %v569
    %v572 = vmul.f32 %v561, %v570
    %v573 = vmul.f32 %v563, %v571
    %v574 = vpack.c.bf16 %v573, %v572
    %v576 = vsel %vm192, %v574, 0
    %578 = vmatprep.subr.bf16.mxu0 0
    %579 = vmatpush1.bf16.msra.mxu0 %v510
    %580 = vmatprep.subr.bf16.mxu0 0
    %581 = vmatpush1.bf16.msra.mxu0 0
    %582 = vmatprep.subr.bf16.mxu0 0
    %583 = vmatpush1.bf16.msra.mxu0 0
    %584 = vmatprep.subr.bf16.mxu0 0
    %585 = vmatpush1.bf16.msra.mxu0 0
    %586 = vmatprep.subr.bf16.mxu0 0
    %587 = vmatpush1.bf16.msra.mxu0 0
    %588 = vmatprep.subr.bf16.mxu0 0
    %589 = vmatpush1.bf16.msra.mxu0 0
    %590 = vmatprep.subr.bf16.mxu0 0
    %591 = vmatpush1.bf16.msra.mxu0 0
    %592 = vmatprep.subr.bf16.mxu0 0
    %593 = vmatpush1.bf16.msra.mxu0 0
    %594 = vmatprep.subr.bf16.mxu0 0
    %595 = vmatpush1.bf16.msra.mxu0 0
    %596 = vmatprep.subr.bf16.mxu0 0
    %597 = vmatpush1.bf16.msra.mxu0 0
    %598 = vmatprep.subr.bf16.mxu0 0
    %599 = vmatpush1.bf16.msra.mxu0 0
    %600 = vmatprep.subr.bf16.mxu0 0
    %601 = vmatpush1.bf16.msra.mxu0 0
    %602 = vmatprep.subr.bf16.mxu0 0
    %603 = vmatpush1.bf16.msra.mxu0 0
    %604 = vmatprep.subr.bf16.mxu0 0
    %605 = vmatpush1.bf16.msra.mxu0 0
    %606 = vmatprep.subr.bf16.mxu0 0
    %607 = vmatpush1.bf16.msra.mxu0 0
    %608 = vmatprep.subr.bf16.mxu0 0
    %609 = vmatpush1.bf16.msra.mxu0 0
    %610 = vmatprep.mubr.bf16.mxu0 0
    %611 = vmatmul.mubr.bf16.gmra.mrb[0].mxu0 %v576
    %v612 = vpop.f32.mrb[0].mxu0
    %v613 = vadd.f32 0.0, %v612
    %v614 = vpop.f32.mrb[0].mxu0
    %v615 = vpop.f32.mrb[0].mxu0
    %v616 = vadd.f32 0.0, %v615
    %v617 = vpop.f32.mrb[0].mxu0
    %618 = vdwg.mxu0
    %v619 = vadd.f32 %v498, %v613
    %v620 = vadd.f32 %v499, %v616
    %v621 = vpack.c.bf16 %v620, %v619
    %v622 = vld [vmem:[%s2 + $0x40] sm:$0xf]
    %v623 = vld [vmem:[%s2 + $0x44] sm:$0xf]
    %v624 = vld [vmem:[%s2 + $0x48] sm:$0xf]
    %v625 = vld [vmem:[%s2 + $0x4c] sm:$0xf]
    %v626 = vld [vmem:[%s2 + $0x50] sm:$0xf]
    %v627 = vld [vmem:[%s2 + $0x54] sm:$0xf]
    %v628 = vld [vmem:[%s2 + $0x58] sm:$0xf]
    %v629 = vld [vmem:[%s2 + $0x5c] sm:$0xf]
    %v630 = vld [vmem:[%s2 + $0x60] sm:$0xf]
    %v631 = vld [vmem:[%s2 + $0x64] sm:$0xf]
    %v632 = vld [vmem:[%s2 + $0x68] sm:$0xf]
    %v633 = vld [vmem:[%s2 + $0x6c] sm:$0xf]
    %v634 = vld [vmem:[%s2 + $0x70] sm:$0xf]
    %v635 = vld [vmem:[%s2 + $0x74] sm:$0xf]
    %v636 = vld [vmem:[%s2 + $0x78] sm:$0xf]
    %v637 = vld [vmem:[%s2 + $0x7c] sm:$0xf]
    %v654 = vunpack.c.l.b16 %v622
    %v655 = vunpack.c.l.b16 %v623
    %v656 = vunpack.c.l.b16 %v624
    %v657 = vunpack.c.l.b16 %v625
    %v658 = vunpack.c.l.b16 %v626
    %v659 = vunpack.c.l.b16 %v627
    %v660 = vunpack.c.l.b16 %v628
    %v661 = vunpack.c.l.b16 %v629
    %v662 = vunpack.c.l.b16 %v630
    %v663 = vunpack.c.l.b16 %v631
    %v664 = vunpack.c.l.b16 %v632
    %v665 = vunpack.c.l.b16 %v633
    %v666 = vunpack.c.l.b16 %v634
    %v667 = vunpack.c.l.b16 %v635
    %v668 = vunpack.c.l.b16 %v636
    %v669 = vunpack.c.l.b16 %v637
    %v670 = vpack.c.b16 %v655, %v654
    %v671 = vpack.c.b16 %v657, %v656
    %v672 = vpack.c.b16 %v659, %v658
    %v673 = vpack.c.b16 %v661, %v660
    %v674 = vpack.c.b16 %v663, %v662
    %v675 = vpack.c.b16 %v665, %v664
    %v676 = vpack.c.b16 %v667, %v666
    %v677 = vpack.c.b16 %v669, %v668
    %686 = vmatprep.subr.bf16.mxu0 0
    %687 = vmatpush1.bf16.msra.mxu0 %v670
    %688 = vmatprep.subr.bf16.mxu0 0
    %689 = vmatpush1.bf16.msra.mxu0 %v671
    %690 = vmatprep.subr.bf16.mxu0 0
    %691 = vmatpush1.bf16.msra.mxu0 %v672
    %692 = vmatprep.subr.bf16.mxu0 0
    %693 = vmatpush1.bf16.msra.mxu0 %v673
    %694 = vmatprep.subr.bf16.mxu0 0
    %695 = vmatpush1.bf16.msra.mxu0 %v674
    %696 = vmatprep.subr.bf16.mxu0 0
    %697 = vmatpush1.bf16.msra.mxu0 %v675
    %698 = vmatprep.subr.bf16.mxu0 0
    %699 = vmatpush1.bf16.msra.mxu0 %v676
    %700 = vmatprep.subr.bf16.mxu0 0
    %701 = vmatpush1.bf16.msra.mxu0 %v677
    %702 = vmatprep.subr.bf16.mxu0 0
    %703 = vmatpush1.bf16.msra.mxu0 0
    %704 = vmatprep.subr.bf16.mxu0 0
    %705 = vmatpush1.bf16.msra.mxu0 0
    %706 = vmatprep.subr.bf16.mxu0 0
    %707 = vmatpush1.bf16.msra.mxu0 0
    %708 = vmatprep.subr.bf16.mxu0 0
    %709 = vmatpush1.bf16.msra.mxu0 0
    %710 = vmatprep.subr.bf16.mxu0 0
    %711 = vmatpush1.bf16.msra.mxu0 0
    %712 = vmatprep.subr.bf16.mxu0 0
    %713 = vmatpush1.bf16.msra.mxu0 0
    %714 = vmatprep.subr.bf16.mxu0 0
    %715 = vmatpush1.bf16.msra.mxu0 0
    %716 = vmatprep.subr.bf16.mxu0 0
    %717 = vmatpush1.bf16.msra.mxu0 0
    %718 = vmatprep.mubr.bf16.mxu0 0
    %719 = vmatmul.mubr.bf16.gmra.mrb[0].mxu0 %v621
    %v720 = vpop.f32.mrb[0].mxu0
    %v721 = vadd.f32 0.0, %v720
    %v722 = vpop.f32.mrb[0].mxu0
    %v723 = vpop.f32.mrb[0].mxu0
    %v724 = vadd.f32 0.0, %v723
    %v725 = vpop.f32.mrb[0].mxu0
    %726 = vdwg.mxu0
    %v727 = vadd.f32 %v19, %v721
    %v728 = vadd.f32 %v20, %v724
    %v729 = vld [vmem:[%s3 + $0x2] sm:$0x1]
    %v730 = vlaneseq
    %v731 = vshrl.u32 %v730, 7
    %v732 = vsub.s32 0, %v731
    %v733 = vrot.slane %v729, %v732
    %v734 = vadd.f32 %v727, %v733
    %v735 = vadd.f32 %v728, %v733
    %v736 = vld [vmem:[%s3 + $0x3] sm:$0x1]
    %v737 = vld [vmem:[%s3 + $0x4] sm:$0x1]
    %v738 = vsel %vm23, %v734, 0.0
    %739 = vadd.xlane.f32.xlu0 %v738
    %v740 = vpop.xlane.xlu0 %739
    %v741 = vsel %vm23, %v735, 0.0
    %742 = vadd.xlane.f32.xlu0 %v741
    %v743 = vpop.xlane.xlu0 %742
    %v744 = vmul.f32 %v740, %v30
    %v745 = vmul.f32 %v743, %v30
    %v746 = vsub.f32 %v734, %v744
    %v747 = vsub.f32 %v735, %v745
    %v748 = vmul.f32 %v746, %v746
    %v749 = vmul.f32 %v747, %v747
    %v750 = vsel %vm23, %v748, 0.0
    %751 = vadd.xlane.f32.xlu0 %v750
    %v752 = vpop.xlane.xlu0 %751
    %v753 = vsel %vm23, %v749, 0.0
    %754 = vadd.xlane.f32.xlu0 %v753
    %v755 = vpop.xlane.xlu0 %754
    %v756 = vmul.f32 %v752, %v30
    %v757 = vmul.f32 %v755, %v30
    %v758 = vadd.f32 %v756, 1e-05
    %v759 = vadd.f32 %v757, 1e-05
    %v760 = vrsqrt.pop %v758
    %v761 = vrsqrt.pop %v759
    %v762 = vmul.f32 %v746, %v760
    %v763 = vmul.f32 %v747, %v761
    %v764 = vlaneseq
    %v765 = vshrl.u32 %v764, 7
    %v766 = vsub.s32 0, %v765
    %v767 = vrot.slane %v736, %v766
    %v768 = vmul.f32 %v762, %v767
    %v769 = vmul.f32 %v763, %v767
    %v770 = vlaneseq
    %v771 = vshrl.u32 %v770, 7
    %v772 = vsub.s32 0, %v771
    %v773 = vrot.slane %v737, %v772
    %v774 = vadd.f32 %v768, %v773
    %v775 = vadd.f32 %v769, %v773
    %v776 = vpack.c.bf16 %v775, %v774
    %v777 = vld [vmem:[%s1 + $0x10] sm:$0xf]
    %v778 = vld [vmem:[%s1 + $0x14] sm:$0xf]
    %v779 = vld [vmem:[%s1 + $0x18] sm:$0xf]
    %v780 = vld [vmem:[%s1 + $0x1c] sm:$0xf]
    %v781 = vld [vmem:[%s3 + $0x7] sm:$0x1]
    %v782 = vlaneseq
    %v783 = vshrl.u32 %v782, 7
    %v784 = vsub.s32 0, %v783
    %v785 = vrot.slane %v781, %v784
    %v790 = vunpack.c.l.b16 %v777
    %v791 = vunpack.c.l.b16 %v778
    %v792 = vunpack.c.l.b16 %v779
    %v793 = vunpack.c.l.b16 %v780
    %v794 = vpack.c.b16 %v791, %v790
    %v795 = vpack.c.b16 %v793, %v792
    %v799 = vsel %vm23, %v776, 0
    %801 = vmatprep.subr.bf16.mxu0 0
    %802 = vmatpush1.bf16.msra.mxu0 %v794
    %803 = vmatprep.subr.bf16.mxu0 0
    %804 = vmatpush1.bf16.msra.mxu0 %v795
    %805 = vmatprep.subr.bf16.mxu0 0
    %806 = vmatpush1.bf16.msra.mxu0 0
    %807 = vmatprep.subr.bf16.mxu0 0
    %808 = vmatpush1.bf16.msra.mxu0 0
    %809 = vmatprep.subr.bf16.mxu0 0
    %810 = vmatpush1.bf16.msra.mxu0 0
    %811 = vmatprep.subr.bf16.mxu0 0
    %812 = vmatpush1.bf16.msra.mxu0 0
    %813 = vmatprep.subr.bf16.mxu0 0
    %814 = vmatpush1.bf16.msra.mxu0 0
    %815 = vmatprep.subr.bf16.mxu0 0
    %816 = vmatpush1.bf16.msra.mxu0 0
    %817 = vmatprep.subr.bf16.mxu0 0
    %818 = vmatpush1.bf16.msra.mxu0 0
    %819 = vmatprep.subr.bf16.mxu0 0
    %820 = vmatpush1.bf16.msra.mxu0 0
    %821 = vmatprep.subr.bf16.mxu0 0
    %822 = vmatpush1.bf16.msra.mxu0 0
    %823 = vmatprep.subr.bf16.mxu0 0
    %824 = vmatpush1.bf16.msra.mxu0 0
    %825 = vmatprep.subr.bf16.mxu0 0
    %826 = vmatpush1.bf16.msra.mxu0 0
    %827 = vmatprep.subr.bf16.mxu0 0
    %828 = vmatpush1.bf16.msra.mxu0 0
    %829 = vmatprep.subr.bf16.mxu0 0
    %830 = vmatpush1.bf16.msra.mxu0 0
    %831 = vmatprep.subr.bf16.mxu0 0
    %832 = vmatpush1.bf16.msra.mxu0 0
    %833 = vmatprep.mubr.bf16.mxu0 0
    %834 = vmatmul.mubr.bf16.gmra.mrb[0].mxu0 %v799
    %v835 = vpop.f32.mrb[0].mxu0
    %v836 = vadd.f32 %v785, %v835
    %v837 = vpop.f32.mrb[0].mxu0
    %v838 = vpop.f32.mrb[0].mxu0
    %v839 = vadd.f32 %v785, %v838
    %v840 = vpop.f32.mrb[0].mxu0
    %841 = vdwg.mxu0
    %v842 = vmul.f32 %v836, 1.702
    %v843 = vmul.f32 %v839, 1.702
    %v844 = vxor.u32 %v842, 2147483648
    %v845 = vxor.u32 %v843, 2147483648
    %v846 = vmul.f32 %v844, 1.442695
    %v847 = vpow.pop %v846
    %v848 = vmul.f32 %v845, 1.442695
    %v849 = vpow.pop %v848
    %v850 = vadd.f32 %v847, 1.0
    %v851 = vadd.f32 %v849, 1.0
    %v852 = vrcp.pop %v850
    %v853 = vmul.f32 1.0, %v852
    %v854 = vrcp.pop %v851
    %v855 = vmul.f32 1.0, %v854
    %v856 = vmul.f32 %v836, %v853
    %v857 = vmul.f32 %v839, %v855
    %v858 = vpack.c.bf16 %v857, %v856
    %v859 = vld [vmem:[%s2] sm:$0xf]
    %v860 = vld [vmem:[%s2 + $0x4] sm:$0xf]
    %v861 = vld [vmem:[%s2 + $0x8] sm:$0xf]
    %v862 = vld [vmem:[%s2 + $0xc] sm:$0xf]
    %v863 = vld [vmem:[%s2 + $0x10] sm:$0xf]
    %v864 = vld [vmem:[%s2 + $0x14] sm:$0xf]
    %v865 = vld [vmem:[%s2 + $0x18] sm:$0xf]
    %v866 = vld [vmem:[%s2 + $0x1c] sm:$0xf]
    %v867 = vld [vmem:[%s2 + $0x20] sm:$0xf]
    %v868 = vld [vmem:[%s2 + $0x24] sm:$0xf]
    %v869 = vld [vmem:[%s2 + $0x28] sm:$0xf]
    %v870 = vld [vmem:[%s2 + $0x2c] sm:$0xf]
    %v871 = vld [vmem:[%s2 + $0x30] sm:$0xf]
    %v872 = vld [vmem:[%s2 + $0x34] sm:$0xf]
    %v873 = vld [vmem:[%s2 + $0x38] sm:$0xf]
    %v874 = vld [vmem:[%s2 + $0x3c] sm:$0xf]
    %v891 = vunpack.c.l.b16 %v859
    %v892 = vunpack.c.l.b16 %v860
    %v893 = vunpack.c.l.b16 %v861
    %v894 = vunpack.c.l.b16 %v862
    %v895 = vunpack.c.l.b16 %v863
    %v896 = vunpack.c.l.b16 %v864
    %v897 = vunpack.c.l.b16 %v865
    %v898 = vunpack.c.l.b16 %v866
    %v899 = vunpack.c.l.b16 %v867
    %v900 = vunpack.c.l.b16 %v868
    %v901 = vunpack.c.l.b16 %v869
    %v902 = vunpack.c.l.b16 %v870
    %v903 = vunpack.c.l.b16 %v871
    %v904 = vunpack.c.l.b16 %v872
    %v905 = vunpack.c.l.b16 %v873
    %v906 = vunpack.c.l.b16 %v874
    %v907 = vpack.c.b16 %v892, %v891
    %v908 = vpack.c.b16 %v894, %v893
    %v909 = vpack.c.b16 %v896, %v895
    %v910 = vpack.c.b16 %v898, %v897
    %v911 = vpack.c.b16 %v900, %v899
    %v912 = vpack.c.b16 %v902, %v901
    %v913 = vpack.c.b16 %v904, %v903
    %v914 = vpack.c.b16 %v906, %v905
    %923 = vmatprep.subr.bf16.mxu0 0
    %924 = vmatpush1.bf16.msra.mxu0 %v907
    %925 = vmatprep.subr.bf16.mxu0 0
    %926 = vmatpush1.bf16.msra.mxu0 %v908
    %927 = vmatprep.subr.bf16.mxu0 0
    %928 = vmatpush1.bf16.msra.mxu0 %v909
    %929 = vmatprep.subr.bf16.mxu0 0
    %930 = vmatpush1.bf16.msra.mxu0 %v910
    %931 = vmatprep.subr.bf16.mxu0 0
    %932 = vmatpush1.bf16.msra.mxu0 %v911
    %933 = vmatprep.subr.bf16.mxu0 0
    %934 = vmatpush1.bf16.msra.mxu0 %v912
    %935 = vmatprep.subr.bf16.mxu0 0
    %936 = vmatpush1.bf16.msra.mxu0 %v913
    %937 = vmatprep.subr.bf16.mxu0 0
    %938 = vmatpush1.bf16.msra.mxu0 %v914
    %939 = vmatprep.subr.bf16.mxu0 0
    %940 = vmatpush1.bf16.msra.mxu0 0
    %941 = vmatprep.subr.bf16.mxu0 0
    %942 = vmatpush1.bf16.msra.mxu0 0
    %943 = vmatprep.subr.bf16.mxu0 0
    %944 = vmatpush1.bf16.msra.mxu0 0
    %945 = vmatprep.subr.bf16.mxu0 0
    %946 = vmatpush1.bf16.msra.mxu0 0
    %947 = vmatprep.subr.bf16.mxu0 0
    %948 = vmatpush1.bf16.msra.mxu0 0
    %949 = vmatprep.subr.bf16.mxu0 0
    %950 = vmatpush1.bf16.msra.mxu0 0
    %951 = vmatprep.subr.bf16.mxu0 0
    %952 = vmatpush1.bf16.msra.mxu0 0
    %953 = vmatprep.subr.bf16.mxu0 0
    %954 = vmatpush1.bf16.msra.mxu0 0
    %955 = vmatprep.mubr.bf16.mxu0 0
    %956 = vmatmul.mubr.bf16.gmra.mrb[0].mxu0 %v858
    %v957 = vpop.f32.mrb[0].mxu0
    %v958 = vadd.f32 0.0, %v957
    %v959 = vpop.f32.mrb[0].mxu0
    %v960 = vpop.f32.mrb[0].mxu0
    %v961 = vadd.f32 0.0, %v960
    %v962 = vpop.f32.mrb[0].mxu0
    %963 = vdwg.mxu0
    %v964 = vadd.f32 %v734, %v958
    %v965 = vadd.f32 %v735, %v961
    %v966 = vld [vmem:[%s3 + $0x5] sm:$0x1]
    %v967 = vlaneseq
    %v968 = vshrl.u32 %v967, 7
    %v969 = vsub.s32 0, %v968
    %v970 = vrot.slane %v966, %v969
    %v971 = vadd.f32 %v964, %v970
    %v972 = vadd.f32 %v965, %v970
    %973 = vst.msk [vmem:[#allocation2] sm:$0xff] %vm23, %v971
    %974 = vst.msk [vmem:[#allocation2 + $0x8] sm:$0xff] %vm23, %v972
    // Predicated region
    $region18: #{tpu_custom_call.1} parent=1 // pred_check
      _
    $region19: #{tpu_custom_call.1} parent=1 // pred_check_branch
      %976 = sbr.rel (0) target = $region21
    $region20: #{tpu_custom_call.1} parent=1 // pred_region
      %s978 = ssub.s32 256, 256
      %979 = vsyncadd [#allocation3], %s978
      %s980 = sshll.u32 [#allocation2], 4
      %s981 = int_to_ptr.vmem [resolvable:$true] %s980
      %986 = dma.vmem_to_hbm [thread:$0]  %s981, 256, %s4, [#allocation3], 128, 128, 8
    $region21: #{tpu_custom_call.1} parent=1 // pred_fallthru
      _
    // Predicated region
    $region22: #{tpu_custom_call.1} parent=1 // pred_check
      _
    $region23: #{tpu_custom_call.1} parent=1 // pred_check_branch
      %988 = sbr.rel (0) target = $region25
    $region24: #{tpu_custom_call.1} parent=1 // pred_region
      %989 = dma.done [#allocation3], 256
    $region25: #{tpu_custom_call.1} parent=1 // pred_fallthru
      _
    %990 = vsyncpa [#allocation3], 1

</llo_original>
